<compile_context>
chip_gen: v5e
topology: v5e:2x2
jax: 0.10.0
libtpu: 0.0.40
codegen_flags: <defaults>
</compile_context>

<pallas_src>
import functools

import jax
import jax.numpy as jnp
from jax.experimental import pallas as pl
from jax.experimental.pallas import tpu as pltpu

EPS = 1e-5


def _conv3_bf16(x_cl, w_bf16):
    """3-tap 'same' conv as ONE fused (C,3C)@(3C,L) bf16 MXU matmul (f32 accumulate).

    x_cl: (C, L) f32.  w_bf16: (C, 3C) bf16, k-major blocks [k=0 | k=1 | k=2].
    Shifted operands come from pltpu.roll + an iota edge-mask, avoiding the
    lane-misaligned slices / lane-axis concats of the previous version.
    """
    c, l = x_cl.shape
    lane = jax.lax.broadcasted_iota(jnp.int32, (c, l), 1)
    x_m1 = jnp.where(lane == 0, 0.0, pltpu.roll(x_cl, shift=1, axis=1))          # x[l-1]
    x_p1 = jnp.where(lane == l - 1, 0.0, pltpu.roll(x_cl, shift=l - 1, axis=1))  # x[l+1]
    stack = jnp.concatenate([x_m1, x_cl, x_p1], axis=0).astype(jnp.bfloat16)     # (3C, L)
    return jnp.dot(w_bf16, stack, preferred_element_type=jnp.float32)            # (C, L) f32


def _finalize_scale_shift(sum_ref, sq_ref, gb_ref, ss_ref, inv_count):
    """Fold batch stats + (gamma, beta) into per-channel scale/shift: y = h*a + c."""
    mean = sum_ref[...] * inv_count                     # (C, 1)
    var = sq_ref[...] * inv_count - mean * mean         # biased variance (training mode)
    gb = gb_ref[...]                                    # (C, 2) = [gamma | beta]
    scale = gb[:, 0:1] * jax.lax.rsqrt(var + EPS)
    shift = gb[:, 1:2] - mean * scale
    ss_ref[...] = jnp.concatenate([scale, shift], axis=1)   # (C, 2) = [scale | shift]


def stats1_kernel(x_ref, w1_ref, gb1_ref, ss1_ref, sum_ref, sq_ref, *, inv_count, nb):
    """Pass 1: conv1 over an (nb, C, L) tile, accumulate BN1 batch stats, emit ss1."""
    step = pl.program_id(0)

    @pl.when(step == 0)
    def _():
        sum_ref[...] = jnp.zeros_like(sum_ref)
        sq_ref[...] = jnp.zeros_like(sq_ref)

    w1 = w1_ref[...]
    c = sum_ref.shape[0]
    s_acc = jnp.zeros((c, 1), jnp.float32)
    q_acc = jnp.zeros((c, 1), jnp.float32)
    for i in range(nb):                                  # static, unrolled
        h1 = _conv3_bf16(x_ref[i], w1)
        s_acc = s_acc + jnp.sum(h1, axis=1, keepdims=True)
        q_acc = q_acc + jnp.sum(h1 * h1, axis=1, keepdims=True)
    sum_ref[...] += s_acc
    sq_ref[...] += q_acc

    @pl.when(step == pl.num_programs(0) - 1)
    def _():
        _finalize_scale_shift(sum_ref, sq_ref, gb1_ref, ss1_ref, inv_count)


def stats2_kernel(x_ref, ss1_ref, w1_ref, w2_ref, gb2_ref, ss2_ref,
                  sum_ref, sq_ref, *, inv_count, nb):
    """Pass 2: recompute conv1 -> bn1+relu -> conv2, accumulate BN2 stats, emit ss2."""
    step = pl.program_id(0)

    @pl.when(step == 0)
    def _():
        sum_ref[...] = jnp.zeros_like(sum_ref)
        sq_ref[...] = jnp.zeros_like(sq_ref)

    w1 = w1_ref[...]
    w2 = w2_ref[...]
    ss1 = ss1_ref[...]
    a_sc, a_sh = ss1[:, 0:1], ss1[:, 1:2]
    c = sum_ref.shape[0]
    s_acc = jnp.zeros((c, 1), jnp.float32)
    q_acc = jnp.zeros((c, 1), jnp.float32)
    for i in range(nb):
        h1 = _conv3_bf16(x_ref[i], w1)
        a = jnp.maximum(h1 * a_sc + a_sh, 0.0)
        h2 = _conv3_bf16(a, w2)
        s_acc = s_acc + jnp.sum(h2, axis=1, keepdims=True)
        q_acc = q_acc + jnp.sum(h2 * h2, axis=1, keepdims=True)
    sum_ref[...] += s_acc
    sq_ref[...] += q_acc

    @pl.when(step == pl.num_programs(0) - 1)
    def _():
        _finalize_scale_shift(sum_ref, sq_ref, gb2_ref, ss2_ref, inv_count)


def final_kernel(x_ref, ss1_ref, ss2_ref, w1_ref, w2_ref, o_ref, *, nb):
    """Pass 3: recompute conv1/bn1/relu/conv2, then bn2 + skip + relu. Parallel grid."""
    w1 = w1_ref[...]
    w2 = w2_ref[...]
    ss1 = ss1_ref[...]
    ss2 = ss2_ref[...]
    for i in range(nb):
        x = x_ref[i]
        h1 = _conv3_bf16(x, w1)
        a = jnp.maximum(h1 * ss1[:, 0:1] + ss1[:, 1:2], 0.0)
        h2 = _conv3_bf16(a, w2)
        o_ref[i] = jnp.maximum(h2 * ss2[:, 0:1] + ss2[:, 1:2] + x, 0.0)


def basic_block_pallas(x_ncl, params, *,
                       tile_budget_bytes=4 << 20,
                       vmem_limit_bytes=48 << 20):
    """x_ncl: (N, C, L) float32, PyTorch layout.  Returns (N, C, L) float32."""
    w1, b1, g1, be1, w2, b2, g2, be2 = params
    del b1, b2   # conv biases cancel exactly under training-mode BatchNorm
    N, C, L = x_ncl.shape

    # Batch tile size: largest divisor of N whose (nb, C, L) f32 tile fits the budget.
    # TODO(synk): for very large C*L (nb=1 tile over budget), tile L as well.
    per_batch = C * L * 4
    nb = 1
    for d in range(1, N + 1):
        if N % d == 0 and d * per_batch <= tile_budget_bytes:
            nb = d
    grid = (N // nb,)

    # torch conv weight (C_out, C_in, K=3) -> fused bf16 (C_out, 3*C_in), k-major
    # blocks matching the [x(l-1); x(l); x(l+1)] row stacking of _conv3_bf16.
    w1m = jnp.transpose(w1, (0, 2, 1)).reshape(C, 3 * C).astype(jnp.bfloat16)
    w2m = jnp.transpose(w2, (0, 2, 1)).reshape(C, 3 * C).astype(jnp.bfloat16)
    gb1 = jnp.stack([g1, be1], axis=1)                   # (C, 2)
    gb2 = jnp.stack([g2, be2], axis=1)                   # (C, 2)

    inv_count = 1.0 / float(N * L)

    tile = pl.BlockSpec((nb, C, L), lambda n: (n, 0, 0))   # nb batches per grid step
    wspec = pl.BlockSpec((C, 3 * C), lambda n: (0, 0))     # resident bf16 weights
    cc2 = pl.BlockSpec((C, 2), lambda n: (0, 0))           # packed per-channel params
    stats_scratch = [pltpu.VMEM((C, 1), jnp.float32),
                     pltpu.VMEM((C, 1), jnp.float32)]

    seq_params = pltpu.CompilerParams(dimension_semantics=("arbitrary",),
                                      vmem_limit_bytes=vmem_limit_bytes)
    par_params = pltpu.CompilerParams(dimension_semantics=("parallel",),
                                      vmem_limit_bytes=vmem_limit_bytes)

    ss1 = pl.pallas_call(
        functools.partial(stats1_kernel, inv_count=inv_count, nb=nb),
        grid=grid,
        in_specs=[tile, wspec, cc2],
        out_specs=cc2,
        out_shape=jax.ShapeDtypeStruct((C, 2), jnp.float32),
        scratch_shapes=stats_scratch,
        compiler_params=seq_params,
    )(x_ncl, w1m, gb1)

    ss2 = pl.pallas_call(
        functools.partial(stats2_kernel, inv_count=inv_count, nb=nb),
        grid=grid,
        in_specs=[tile, cc2, wspec, wspec, cc2],
        out_specs=cc2,
        out_shape=jax.ShapeDtypeStruct((C, 2), jnp.float32),
        scratch_shapes=stats_scratch,
        compiler_params=seq_params,
    )(x_ncl, ss1, w1m, w2m, gb2)

    out = pl.pallas_call(
        functools.partial(final_kernel, nb=nb),
        grid=grid,
        in_specs=[tile, cc2, cc2, wspec, wspec],
        out_specs=tile,
        out_shape=jax.ShapeDtypeStruct((N, C, L), jnp.float32),
        compiler_params=par_params,
    )(x_ncl, ss1, ss2, w1m, w2m)
    return out


def basic_block_ref(x_ncl, params):
    """Pure-JAX f32 reference matching PyTorch BasicBlock.forward (training-mode BN)."""
    w1, b1, g1, be1, w2, b2, g2, be2 = params

    def conv(x, w, b):
        y = jax.lax.conv_general_dilated(
            x, w, window_strides=(1,), padding=[(1, 1)],
            dimension_numbers=("NCH", "OIH", "NCH"))
        return y + b[None, :, None]

    def bn(x, g, be):
        mean = x.mean(axis=(0, 2), keepdims=True)
        var = ((x - mean) ** 2).mean(axis=(0, 2), keepdims=True)
        return (x - mean) / jnp.sqrt(var + EPS) * g[None, :, None] + be[None, :, None]

    h = jax.nn.relu(bn(conv(x_ncl, w1, b1), g1, be1))
    out = bn(conv(h, w2, b2), g2, be2) + x_ncl
    return jax.nn.relu(out)


def init_params(key, channels):
    ks = jax.random.split(key, 6)
    scale = 1.0 / jnp.sqrt(channels * 3.0)
    w1 = jax.random.uniform(ks[0], (channels, channels, 3), jnp.float32, -scale, scale)
    b1 = jax.random.uniform(ks[1], (channels,), jnp.float32, -scale, scale)
    w2 = jax.random.uniform(ks[2], (channels, channels, 3), jnp.float32, -scale, scale)
    b2 = jax.random.uniform(ks[3], (channels,), jnp.float32, -scale, scale)
    g1 = 1.0 + 0.1 * jax.random.normal(ks[4], (channels,), jnp.float32)
    be1 = 0.1 * jax.random.normal(ks[5], (channels,), jnp.float32)
    g2 = jnp.ones((channels,), jnp.float32)
    be2 = jnp.zeros((channels,), jnp.float32)
    return (w1, b1, g1, be1, w2, b2, g2, be2)


if __name__ == "__main__":
    key = jax.random.PRNGKey(0)
    k_x, k_p = jax.random.split(key)

    N, C, L = 4, 8, 256                                    # (batch, channels, length)
    x = jax.random.normal(k_x, (N, C, L), jnp.float32)
    params = init_params(k_p, C)

    # Tiny tile budget so these toy shapes still exercise the multi-step
    # resident-accumulator grid path (nb=2 -> grid=(2,)).  Production default
    # (4 MiB tiles, 48 MiB scoped VMEM) is set on basic_block_pallas itself.
    out = basic_block_pallas(x, params, tile_budget_bytes=16 << 10)
    out = jax.block_until_ready(out)

    ref = basic_block_ref(x, params)
    assert out.shape == (N, C, L)
    max_diff = float(jnp.max(jnp.abs(out - ref)))
    # bf16 MXU operands (f32 accumulate / f32 BN stats) -> ~1e-2 relative error.
    assert jnp.allclose(out, ref, rtol=5e-2, atol=5e-2), f"max abs diff {max_diff}"

    print("KERNEL_OK")
</pallas_src>

<mosaic_0001>
module attributes {stable_mosaic.version = 11 : i64} {
  func.func @stats1_kernel(%arg0: i32, %arg1: memref<2x8x256xf32, #tpu.memory_space<vmem>>, %arg2: memref<8x24xbf16, #tpu.memory_space<vmem>>, %arg3: memref<8x2xf32, #tpu.memory_space<vmem>>, %arg4: memref<8x2xf32, #tpu.memory_space<vmem>>, %arg5: memref<8x1xf32, #tpu.memory_space<vmem>>, %arg6: memref<8x1xf32, #tpu.memory_space<vmem>>) attributes {dimension_semantics = [#tpu.dimension_semantics<arbitrary>], iteration_bounds = array<i64: 2>, scalar_prefetch = 0 : i64, scratch_operands = 2 : i64, tpu.core_type = #tpu.core_type<tc>, window_params = [{transform_indices = @transform_0, window_bounds = array<i64: 2, 8, 256>}, {pipeline_mode = #tpu.pipeline_mode<synchronous>, transform_indices = @transform_1, window_bounds = array<i64: 8, 24>}, {pipeline_mode = #tpu.pipeline_mode<synchronous>, transform_indices = @transform_2, window_bounds = array<i64: 8, 2>}, {pipeline_mode = #tpu.pipeline_mode<synchronous>, transform_indices = @transform_3, window_bounds = array<i64: 8, 2>}]} {
    %c0_i32 = arith.constant 0 : i32
    %0 = arith.cmpi eq, %arg0, %c0_i32 : i32
    %1 = arith.extui %0 : i1 to i32
    %c0_i32_0 = arith.constant 0 : i32
    %2 = arith.cmpi ne, %1, %c0_i32_0 : i32
    scf.if %2 {
      %cst_34 = arith.constant 0.000000e+00 : f32
      %61 = vector.broadcast %cst_34 : f32 to vector<8x1xf32>
      %c0_35 = arith.constant 0 : index
      %c0_36 = arith.constant 0 : index
      %62 = vector.load %arg5[%c0_35, %c0_36] : memref<8x1xf32, #tpu.memory_space<vmem>>, vector<8x1xf32>
      tpu.vector_store %arg5[%c0_35, %c0_36], %61 {strides = array<i32>} : memref<8x1xf32, #tpu.memory_space<vmem>>, vector<8x1xf32>,
      %cst_37 = arith.constant 0.000000e+00 : f32
      %63 = vector.broadcast %cst_37 : f32 to vector<8x1xf32>
      %c0_38 = arith.constant 0 : index
      %c0_39 = arith.constant 0 : index
      %64 = vector.load %arg6[%c0_38, %c0_39] : memref<8x1xf32, #tpu.memory_space<vmem>>, vector<8x1xf32>
      tpu.vector_store %arg6[%c0_38, %c0_39], %63 {strides = array<i32>} : memref<8x1xf32, #tpu.memory_space<vmem>>, vector<8x1xf32>,
    } else {
    }
    %c0 = arith.constant 0 : index
    %c0_1 = arith.constant 0 : index
    %3 = vector.load %arg2[%c0, %c0_1] : memref<8x24xbf16, #tpu.memory_space<vmem>>, vector<8x24xbf16>
    %cst = arith.constant 0.000000e+00 : f32
    %4 = vector.broadcast %cst : f32 to vector<8x1xf32>
    %cst_2 = arith.constant 0.000000e+00 : f32
    %5 = vector.broadcast %cst_2 : f32 to vector<8x1xf32>
    %c0_3 = arith.constant 0 : index
    %c0_4 = arith.constant 0 : index
    %c0_5 = arith.constant 0 : index
    %6 = vector.load %arg1[%c0_3, %c0_4, %c0_5] : memref<2x8x256xf32, #tpu.memory_space<vmem>>, vector<1x8x256xf32>
    %7 = vector.shape_cast %6 : vector<1x8x256xf32> to vector<8x256xf32>
    %8 = tpu.iota {dimensions = array<i32: 1>} : vector<8x256xi32>
    %c0_i32_6 = arith.constant 0 : i32
    %9 = vector.broadcast %c0_i32_6 : i32 to vector<8x256xi32>
    %10 = arith.cmpi eq, %8, %9 : vector<8x256xi32>
    %c1_i32 = arith.constant 1 : i32
    %11 = tpu.dynamic_rotate %7 by %c1_i32 dim 1 : vector<8x256xf32>, i32 -> vector<8x256xf32>
    %cst_7 = arith.constant 0.000000e+00 : f32
    %12 = vector.broadcast %cst_7 : f32 to vector<8x256xf32>
    %13 = arith.select %10, %12, %11 : vector<8x256xi1>, vector<8x256xf32>
    %c255_i32 = arith.constant 255 : i32
    %14 = vector.broadcast %c255_i32 : i32 to vector<8x256xi32>
    %15 = arith.cmpi eq, %8, %14 : vector<8x256xi32>
    %c255_i32_8 = arith.constant 255 : i32
    %16 = tpu.dynamic_rotate %7 by %c255_i32_8 dim 1 : vector<8x256xf32>, i32 -> vector<8x256xf32>
    %cst_9 = arith.constant 0.000000e+00 : f32
    %17 = vector.broadcast %cst_9 : f32 to vector<8x256xf32>
    %18 = arith.select %15, %17, %16 : vector<8x256xi1>, vector<8x256xf32>
    %19 = tpu.concatenate %13, %7, %18 in 0 : vector<8x256xf32>, vector<8x256xf32>, vector<8x256xf32> -> vector<24x256xf32>
    %20 = arith.truncf %19 : vector<24x256xf32> to vector<24x256xbf16>
    %cst_10 = arith.constant dense<0.000000e+00> : vector<8x256xf32>
    %21 = tpu.matmul %3, %20, %cst_10 {dimension_numbers = #tpu.dot_dimension_numbers<[1], [0], [0], [1], [0, 0, 1, 1], [], []>} : vector<8x24xbf16>, vector<24x256xbf16>, vector<8x256xf32> -> vector<8x256xf32>
    %cst_11 = arith.constant dense<0.000000e+00> : vector<8xf32>
    %22 = vector.multi_reduction <add>, %21, %cst_11 [1] : vector<8x256xf32> to vector<8xf32>
    %23 = vector.shape_cast %22 : vector<8xf32> to vector<8x1xf32>
    %24 = arith.addf %4, %23 : vector<8x1xf32>
    %25 = arith.mulf %21, %21 : vector<8x256xf32>
    %cst_12 = arith.constant dense<0.000000e+00> : vector<8xf32>
    %26 = vector.multi_reduction <add>, %25, %cst_12 [1] : vector<8x256xf32> to vector<8xf32>
    %27 = vector.shape_cast %26 : vector<8xf32> to vector<8x1xf32>
    %28 = arith.addf %5, %27 : vector<8x1xf32>
    %c1 = arith.constant 1 : index
    %c0_13 = arith.constant 0 : index
    %c0_14 = arith.constant 0 : index
    %29 = vector.load %arg1[%c1, %c0_13, %c0_14] : memref<2x8x256xf32, #tpu.memory_space<vmem>>, vector<1x8x256xf32>
    %30 = vector.shape_cast %29 : vector<1x8x256xf32> to vector<8x256xf32>
    %31 = tpu.iota {dimensions = array<i32: 1>} : vector<8x256xi32>
    %c0_i32_15 = arith.constant 0 : i32
    %32 = vector.broadcast %c0_i32_15 : i32 to vector<8x256xi32>
    %33 = arith.cmpi eq, %31, %32 : vector<8x256xi32>
    %c1_i32_16 = arith.constant 1 : i32
    %34 = tpu.dynamic_rotate %30 by %c1_i32_16 dim 1 : vector<8x256xf32>, i32 -> vector<8x256xf32>
    %cst_17 = arith.constant 0.000000e+00 : f32
    %35 = vector.broadcast %cst_17 : f32 to vector<8x256xf32>
    %36 = arith.select %33, %35, %34 : vector<8x256xi1>, vector<8x256xf32>
    %c255_i32_18 = arith.constant 255 : i32
    %37 = vector.broadcast %c255_i32_18 : i32 to vector<8x256xi32>
    %38 = arith.cmpi eq, %31, %37 : vector<8x256xi32>
    %c255_i32_19 = arith.constant 255 : i32
    %39 = tpu.dynamic_rotate %30 by %c255_i32_19 dim 1 : vector<8x256xf32>, i32 -> vector<8x256xf32>
    %cst_20 = arith.constant 0.000000e+00 : f32
    %40 = vector.broadcast %cst_20 : f32 to vector<8x256xf32>
    %41 = arith.select %38, %40, %39 : vector<8x256xi1>, vector<8x256xf32>
    %42 = tpu.concatenate %36, %30, %41 in 0 : vector<8x256xf32>, vector<8x256xf32>, vector<8x256xf32> -> vector<24x256xf32>
    %43 = arith.truncf %42 : vector<24x256xf32> to vector<24x256xbf16>
    %cst_21 = arith.constant dense<0.000000e+00> : vector<8x256xf32>
    %44 = tpu.matmul %3, %43, %cst_21 {dimension_numbers = #tpu.dot_dimension_numbers<[1], [0], [0], [1], [0, 0, 1, 1], [], []>} : vector<8x24xbf16>, vector<24x256xbf16>, vector<8x256xf32> -> vector<8x256xf32>
    %cst_22 = arith.constant dense<0.000000e+00> : vector<8xf32>
    %45 = vector.multi_reduction <add>, %44, %cst_22 [1] : vector<8x256xf32> to vector<8xf32>
    %46 = vector.shape_cast %45 : vector<8xf32> to vector<8x1xf32>
    %47 = arith.addf %24, %46 : vector<8x1xf32>
    %48 = arith.mulf %44, %44 : vector<8x256xf32>
    %cst_23 = arith.constant dense<0.000000e+00> : vector<8xf32>
    %49 = vector.multi_reduction <add>, %48, %cst_23 [1] : vector<8x256xf32> to vector<8xf32>
    %50 = vector.shape_cast %49 : vector<8xf32> to vector<8x1xf32>
    %51 = arith.addf %28, %50 : vector<8x1xf32>
    %c0_24 = arith.constant 0 : index
    %c0_25 = arith.constant 0 : index
    %52 = vector.load %arg5[%c0_24, %c0_25] : memref<8x1xf32, #tpu.memory_space<vmem>>, vector<8x1xf32>
    %53 = arith.addf %52, %47 : vector<8x1xf32>
    %c0_26 = arith.constant 0 : index
    %c0_27 = arith.constant 0 : index
    %54 = vector.load %arg5[%c0_26, %c0_27] : memref<8x1xf32, #tpu.memory_space<vmem>>, vector<8x1xf32>
    tpu.vector_store %arg5[%c0_26, %c0_27], %53 {strides = array<i32>} : memref<8x1xf32, #tpu.memory_space<vmem>>, vector<8x1xf32>,
    %c0_28 = arith.constant 0 : index
    %c0_29 = arith.constant 0 : index
    %55 = vector.load %arg6[%c0_28, %c0_29] : memref<8x1xf32, #tpu.memory_space<vmem>>, vector<8x1xf32>
    %56 = arith.addf %55, %51 : vector<8x1xf32>
    %c0_30 = arith.constant 0 : index
    %c0_31 = arith.constant 0 : index
    %57 = vector.load %arg6[%c0_30, %c0_31] : memref<8x1xf32, #tpu.memory_space<vmem>>, vector<8x1xf32>
    tpu.vector_store %arg6[%c0_30, %c0_31], %56 {strides = array<i32>} : memref<8x1xf32, #tpu.memory_space<vmem>>, vector<8x1xf32>,
    %c1_i32_32 = arith.constant 1 : i32
    %58 = arith.cmpi eq, %arg0, %c1_i32_32 : i32
    %59 = arith.extui %58 : i1 to i32
    %c0_i32_33 = arith.constant 0 : i32
    %60 = arith.cmpi ne, %59, %c0_i32_33 : i32
    scf.if %60 {
      %c0_34 = arith.constant 0 : index
      %c0_35 = arith.constant 0 : index
      %61 = vector.load %arg5[%c0_34, %c0_35] : memref<8x1xf32, #tpu.memory_space<vmem>>, vector<8x1xf32>
      %cst_36 = arith.constant 9.765625E-4 : f32
      %62 = vector.broadcast %cst_36 : f32 to vector<8x1xf32>
      %63 = arith.mulf %61, %62 : vector<8x1xf32>
      %c0_37 = arith.constant 0 : index
      %c0_38 = arith.constant 0 : index
      %64 = vector.load %arg6[%c0_37, %c0_38] : memref<8x1xf32, #tpu.memory_space<vmem>>, vector<8x1xf32>
      %cst_39 = arith.constant 9.765625E-4 : f32
      %65 = vector.broadcast %cst_39 : f32 to vector<8x1xf32>
      %66 = arith.mulf %64, %65 : vector<8x1xf32>
      %67 = arith.mulf %63, %63 : vector<8x1xf32>
      %68 = arith.subf %66, %67 : vector<8x1xf32>
      %c0_40 = arith.constant 0 : index
      %c0_41 = arith.constant 0 : index
      %69 = vector.load %arg3[%c0_40, %c0_41] : memref<8x2xf32, #tpu.memory_space<vmem>>, vector<8x2xf32>
      %70 = vector.extract_strided_slice %69 {offsets = [0, 0], sizes = [8, 1], strides = [1, 1]} : vector<8x2xf32> to vector<8x1xf32>
      %cst_42 = arith.constant 9.99999974E-6 : f32
      %71 = vector.broadcast %cst_42 : f32 to vector<8x1xf32>
      %72 = arith.addf %68, %71 : vector<8x1xf32>
      %73 = math.rsqrt %72 : vector<8x1xf32>
      %74 = arith.mulf %70, %73 : vector<8x1xf32>
      %75 = vector.extract_strided_slice %69 {offsets = [0, 1], sizes = [8, 1], strides = [1, 1]} : vector<8x2xf32> to vector<8x1xf32>
      %76 = arith.mulf %63, %74 : vector<8x1xf32>
      %77 = arith.subf %75, %76 : vector<8x1xf32>
      %78 = tpu.concatenate %74, %77 in 1 : vector<8x1xf32>, vector<8x1xf32> -> vector<8x2xf32>
      %c0_43 = arith.constant 0 : index
      %c0_44 = arith.constant 0 : index
      %79 = vector.load %arg4[%c0_43, %c0_44] : memref<8x2xf32, #tpu.memory_space<vmem>>, vector<8x2xf32>
      tpu.vector_store %arg4[%c0_43, %c0_44], %78 {strides = array<i32>} : memref<8x2xf32, #tpu.memory_space<vmem>>, vector<8x2xf32>,
    } else {
    }
    return
  }
  func.func @transform_0(%arg0: i32) -> (i32, i32, i32) {
    %c0_i32 = arith.constant 0 : i32
    %c0_i32_0 = arith.constant 0 : i32
    %c0_i32_1 = arith.constant 0 : i32
    return %arg0, %c0_i32, %c0_i32_0 : i32, i32, i32
  }
  func.func @transform_1(%arg0: i32) -> (i32, i32) {
    %c0_i32 = arith.constant 0 : i32
    %c0_i32_0 = arith.constant 0 : i32
    %c0_i32_1 = arith.constant 0 : i32
    return %c0_i32, %c0_i32_0 : i32, i32
  }
  func.func @transform_2(%arg0: i32) -> (i32, i32) {
    %c0_i32 = arith.constant 0 : i32
    %c0_i32_0 = arith.constant 0 : i32
    %c0_i32_1 = arith.constant 0 : i32
    return %c0_i32, %c0_i32_0 : i32, i32
  }
  func.func @transform_3(%arg0: i32) -> (i32, i32) {
    %c0_i32 = arith.constant 0 : i32
    %c0_i32_0 = arith.constant 0 : i32
    %c0_i32_1 = arith.constant 0 : i32
    return %c0_i32, %c0_i32_0 : i32, i32
  }
}

</mosaic_0001>

<llo_original>
// kernel: tpu_custom_call.1
$region0: #{tpu_custom_call.1}
  #allocation0 [shape = 'u32[]', space=smem, size = 0x4, offset = 0x4, fixed_abs, tag = 'smem constant byte address 0x4 - core index']
  #allocation1 [shape = 'u32[72,128]{1,0:T(1,128)}', space=vmem, size = 0x9000, scoped, tag = 'internal scratch']
  #allocation2 [shape = 'f32[8,1]{1,0:T(8,128)}', space=vmem, size = 0x1000, scoped, tag = 'scratch operand']
  #allocation3 [shape = 'f32[8,1]{1,0:T(8,128)}', space=vmem, size = 0x1000, scoped, tag = 'scratch operand']
  %s0 = inlined_call_operand.hbm [shape: f32[4,8,256], index: 0, kind: input, shape index: {}]
  %s1 = inlined_call_operand.vmem [shape: bf16[8,24], index: 1, kind: input, shape index: {}]
  %s2 = inlined_call_operand.vmem [shape: f32[8,2], index: 2, kind: input, shape index: {}]
  %s3 = inlined_call_operand.vmem [shape: f32[8,2], index: 3, kind: output, shape index: {}]
  %s4 = sld [smem:[#allocation0]]
  $region57: #{tpu_custom_call.1} parent=0
    _
  %s6 = ssub.s32 1, %s4
  %s7 = scalar_select 0, %s6, %s4
  $region1: #{tpu_custom_call.1} parent=0
    #allocation4 [shape = 'u8[32768]{0}', space=vmem, size = 0x8000, scoped, tag = 'input window, operand 0']
    #allocation5 [shape = 's32[2]{0}', space=sflag, size = 0x8, scoped, tag = 'scoped memory for tpu_custom_call.1']
    %8 = vsyncpa [#allocation5], 0
    %s9 = scalar_lea.sflag [#allocation5], 1
    %10 = vsyncpa %s9, 0
    loop: start=0, step=1, limit=4
    $region2: #{tpu_custom_call.1} parent=1 // loop_pre_header
      _
    $region3: #{tpu_custom_call.1} parent=1 // loop_header
      %s12 = sphi 0, %s16
      %p13 = scmp.ge.s32.totalorder %s12, 4
      %s22 = sphi 0, %s24
      %s25 = sphi 0, %s22
      %s26 = sphi 0, %s25
      %s42 = sphi 0, %s26
      %s46 = sphi 0, %s46
      %s48 = sphi 0, %s46
      %s49 = sphi 0, %s48
      %s63 = sphi 0, %s49
      %s67 = sphi 0, %s67
      %s69 = sphi 0, %s67
      %s70 = sphi 0, %s69
      %s84 = sphi 0, %s70
      %s88 = sphi 0, %s88
      %s90 = sphi 0, %s88
      %s91 = sphi 0, %s90
      %s105 = sphi 0, %s91
    $region4: #{tpu_custom_call.1} parent=1 // loop_header_branch
      %15 = sbr.rel (%p13) target = $region8
    $region5: #{tpu_custom_call.1} parent=1 // loop_body
      %s17 = ssub.s32 %s12, 1
      %s18 = ssub.s32 %s12, 2
      %s19 = sadd.s32 %s12, 1
      %s20 = ssub.s32 %s12, %s19
      %p21 = scmp.eq.s32.totalorder %s20, 0
      %s23 = sadd.s32 %s22, 1
      %s24 = scalar_select %p21, %s22, %s23
      %p27 = pneg %p21
      %p28 = scmp.eq.s32.totalorder %s12, 1
      %p29 = por %p27, %p28
      %p30 = scmp.ne.s32.totalorder %s22, %s25
      %p31 = scmp.eq.s32.totalorder %s12, 0
      %p32 = por %p30, %p31
      %p33 = scmp.ne.s32.totalorder %s22, %s25
      %p34 = scmp.eq.s32.totalorder %s17, 1
      %p35 = por %p33, %p34
      %p36 = scmp.ne.s32.totalorder %s25, %s26
      %p37 = scmp.eq.s32.totalorder %s17, 0
      %p38 = por %p36, %p37
      %p39 = scmp.ne.s32.totalorder %s25, %s26
      %p40 = scmp.eq.s32.totalorder %s18, 1
      %p41 = por %p39, %p40
      %p43 = scmp.ne.s32.totalorder %s26, %s42
      %p44 = scmp.eq.s32.totalorder %s18, 0
      %p45 = por %p43, %p44
      %s47 = sadd.s32 %s46, 1
      %p50 = scmp.eq.s32.totalorder %s12, 1
      %p51 = scmp.ne.s32.totalorder %s46, %s48
      %p52 = scmp.eq.s32.totalorder %s12, 0
      %p53 = por %p51, %p52
      %p54 = scmp.ne.s32.totalorder %s46, %s48
      %p55 = scmp.eq.s32.totalorder %s17, 1
      %p56 = por %p54, %p55
      %p57 = scmp.ne.s32.totalorder %s48, %s49
      %p58 = scmp.eq.s32.totalorder %s17, 0
      %p59 = por %p57, %p58
      %p60 = scmp.ne.s32.totalorder %s48, %s49
      %p61 = scmp.eq.s32.totalorder %s18, 1
      %p62 = por %p60, %p61
      %p64 = scmp.ne.s32.totalorder %s49, %s63
      %p65 = scmp.eq.s32.totalorder %s18, 0
      %p66 = por %p64, %p65
      %s68 = sadd.s32 %s67, 1
      %p71 = scmp.eq.s32.totalorder %s12, 1
      %p72 = scmp.ne.s32.totalorder %s67, %s69
      %p73 = scmp.eq.s32.totalorder %s12, 0
      %p74 = por %p72, %p73
      %p75 = scmp.ne.s32.totalorder %s67, %s69
      %p76 = scmp.eq.s32.totalorder %s17, 1
      %p77 = por %p75, %p76
      %p78 = scmp.ne.s32.totalorder %s69, %s70
      %p79 = scmp.eq.s32.totalorder %s17, 0
      %p80 = por %p78, %p79
      %p81 = scmp.ne.s32.totalorder %s69, %s70
      %p82 = scmp.eq.s32.totalorder %s18, 1
      %p83 = por %p81, %p82
      %p85 = scmp.ne.s32.totalorder %s70, %s84
      %p86 = scmp.eq.s32.totalorder %s18, 0
      %p87 = por %p85, %p86
      %s89 = sadd.s32 %s88, 1
      %p92 = scmp.eq.s32.totalorder %s12, 1
      %p93 = scmp.ne.s32.totalorder %s88, %s90
      %p94 = scmp.eq.s32.totalorder %s12, 0
      %p95 = por %p93, %p94
      %p96 = scmp.ne.s32.totalorder %s88, %s90
      %p97 = scmp.eq.s32.totalorder %s17, 1
      %p98 = por %p96, %p97
      %p99 = scmp.ne.s32.totalorder %s90, %s91
      %p100 = scmp.eq.s32.totalorder %s17, 0
      %p101 = por %p99, %p100
      %p102 = scmp.ne.s32.totalorder %s90, %s91
      %p103 = scmp.eq.s32.totalorder %s18, 1
      %p104 = por %p102, %p103
      %p106 = scmp.ne.s32.totalorder %s91, %s105
      %p107 = scmp.eq.s32.totalorder %s18, 0
      %p108 = por %p106, %p107
      %p109 = scmp.le.s32.totalorder 1, %s12
      %p110 = scmp.lt.s32.totalorder %s12, 3
      %p111 = pnand %p109, %p110
      %p112 = pneg %p111
      // Predicated region
      $region9: #{tpu_custom_call.1} parent=5 // pred_check
        _
      $region10: #{tpu_custom_call.1} parent=5 // pred_check_branch
        %114 = sbr.rel (%p111) target = $region12
      $region11: #{tpu_custom_call.1} parent=5 // pred_region
        %s115 = ssub.s32 %s12, 1
        // Predicated region
        $region13: #{tpu_custom_call.1} parent=11 // pred_check
          %p116 = pneg %p59
        $region14: #{tpu_custom_call.1} parent=11 // pred_check_branch
          %118 = sbr.rel (%p116) target = $region16
        $region15: #{tpu_custom_call.1} parent=11 // pred_region
          _
        $region16: #{tpu_custom_call.1} parent=11 // pred_fallthru
          _
        // Predicated region
        $region17: #{tpu_custom_call.1} parent=11 // pred_check
          %p119 = pneg %p80
        $region18: #{tpu_custom_call.1} parent=11 // pred_check_branch
          %121 = sbr.rel (%p119) target = $region20
        $region19: #{tpu_custom_call.1} parent=11 // pred_region
          _
        $region20: #{tpu_custom_call.1} parent=11 // pred_fallthru
          _
      $region12: #{tpu_custom_call.1} parent=5 // pred_fallthru
        _
      %p122 = scmp.lt.s32.totalorder %s12, 2
      // Predicated region
      $region21: #{tpu_custom_call.1} parent=5 // pred_check
        %p123 = pneg %p122
      $region22: #{tpu_custom_call.1} parent=5 // pred_check_branch
        %125 = sbr.rel (%p123) target = $region24
      $region23: #{tpu_custom_call.1} parent=5 // pred_region
        // Predicated region
        $region25: #{tpu_custom_call.1} parent=23 // pred_check
          %p126 = pneg %p32
        $region26: #{tpu_custom_call.1} parent=23 // pred_check_branch
          %128 = sbr.rel (%p126) target = $region28
        $region27: #{tpu_custom_call.1} parent=23 // pred_region
          %s129 = sand.u32 %s22, 1
          %s130 = scalar_lea.sflag [#allocation5], %s129
          %s131 = sand.u32 %s22, 1
          %s132 = smul.addr %s131, 32
          %s133 = scalar_lea.vmem [#allocation4], %s132
          %s134 = smul.u32 2, %s12
          %136 = vsyncadd %s130, 0
          %s137 = smul.addr %s134, 2
          %s138 = smul.addr %s137, 8
          %s139 = scalar_lea.hbm %s0, %s138
          %s140 = sshll.u32 %s139, 4
          %s141 = int_to_ptr.hbm [resolvable:$true] %s140
          %s142 = sshll.u32 %s133, 4
          %s143 = int_to_ptr.vmem [resolvable:$true] %s142
          %148 = dma.hbm_to_vmem [thread:$0]  %s141, 512, %s143, %s130, 256, 256, 16
        $region28: #{tpu_custom_call.1} parent=23 // pred_fallthru
          _
      $region24: #{tpu_custom_call.1} parent=5 // pred_fallthru
        _
      %p149 = scmp.le.s32.totalorder 1, %s12
      %p150 = scmp.lt.s32.totalorder %s12, 3
      %p151 = pnand %p149, %p150
      %p152 = pneg %p151
      // Predicated region
      $region29: #{tpu_custom_call.1} parent=5 // pred_check
        _
      $region30: #{tpu_custom_call.1} parent=5 // pred_check_branch
        %154 = sbr.rel (%p151) target = $region32
      $region31: #{tpu_custom_call.1} parent=5 // pred_region
        %s155 = ssub.s32 %s12, 1
        %s156 = sand.u32 %s25, 1
        %s157 = scalar_lea.sflag [#allocation5], %s156
        %s158 = sand.u32 %s25, 1
        %s159 = smul.addr %s158, 32
        %s160 = scalar_lea.vmem [#allocation4], %s159
        // Predicated region
        $region33: #{tpu_custom_call.1} parent=31 // pred_check
          %p161 = pneg %p38
        $region34: #{tpu_custom_call.1} parent=31 // pred_check_branch
          %163 = sbr.rel (%p161) target = $region36
        $region35: #{tpu_custom_call.1} parent=31 // pred_region
          %165 = dma.done %s157, 512
        $region36: #{tpu_custom_call.1} parent=31 // pred_fallthru
          _
        %s166 = sand.u32 %s25, 1
        %s167 = scalar_lea.sflag [#allocation5], %s166
        %s168 = sand.u32 %s25, 1
        %s169 = smul.addr %s168, 32
        %s170 = scalar_lea.vmem [#allocation4], %s169
        %p171 = pneg %p38
        %p172 = pneg %p35
        %p173 = pneg %p59
        %p174 = pneg %p56
        %p175 = pneg %p80
        %p176 = pneg %p77
        %p177 = pneg %p101
        %p178 = pneg %p98
        %s179 = smul.u32 2, %s17
        %p181 = scmp.eq.s32.totalorder %s17, 0
        // Predicated region
        $region37: #{tpu_custom_call.1} parent=31 // pred_check
          %p182 = pneg %p181
        $region38: #{tpu_custom_call.1} parent=31 // pred_check_branch
          %184 = sbr.rel (%p182) target = $region40
        $region39: #{tpu_custom_call.1} parent=31 // pred_region
          %vm185 = vcmask 7168
          %186 = vst.msk [vmem:[#allocation2] sm:$0xff] %vm185, 0.0
          %187 = vst.msk [vmem:[#allocation3] sm:$0xff] %vm185, 0.0
        $region40: #{tpu_custom_call.1} parent=31 // pred_fallthru
          _
        %v188 = vld [vmem:[%s1] sm:$0xf]
        %v189 = vld [vmem:[%s160] sm:$0xff]
        %v190 = vld [vmem:[%s160 + $0x8] sm:$0xff]
        %v191 = vlaneseq
        %v192 = vand.u32 %v191, 127
        %v193 = vadd.s32 %v192, 128
        %vm194 = vcmp.eq.s32.totalorder %v192, 0
        %vm195 = vcmp.eq.s32.totalorder %v193, 0
        %196 = vrot.lane.b32.xlu0 %v189, 1
        %v197 = vpop.permute.xlu0 %196
        %198 = vrot.lane.b32.xlu0 %v190, 1
        %v199 = vpop.permute.xlu0 %198
        %vm200 = vcmp.lt.s32.totalorder %v192, 1
        %v201 = vsel %vm200, %v197, %v199
        %v202 = vsel %vm200, %v199, %v197
        %v203 = vsel %vm194, 0.0, %v202
        %v204 = vsel %vm195, 0.0, %v201
        %vm205 = vcmp.eq.s32.totalorder %v192, 255
        %vm206 = vcmp.eq.s32.totalorder %v193, 255
        %207 = vrot.lane.b32.xlu0 %v189, 127
        %v208 = vpop.permute.xlu0 %207
        %209 = vrot.lane.b32.xlu0 %v190, 127
        %v210 = vpop.permute.xlu0 %209
        %vm211 = vcmp.lt.s32.totalorder %v192, 127
        %v212 = vsel %vm211, %v208, %v210
        %v213 = vsel %vm211, %v210, %v208
        %v214 = vsel %vm205, 0.0, %v212
        %v215 = vsel %vm206, 0.0, %v213
        %v216 = vpack.c.bf16 %v189, %v203
        %v217 = vpack.c.bf16 %v190, %v204
        %v218 = vpack.c.bf16 %v214, %v214
        %v219 = vpack.c.bf16 %v215, %v215
        %vm220 = vcmask 195584
        %v222 = vsel %vm220, %v188, 0
        %vm224 = vcmask 1043456
        %v226 = vsel %vm224, %v218, 0
        %v229 = vsel %vm224, %v219, 0
        %231 = vmatpush.bf16.msra.mxu0 0
        %232 = vmatpush.bf16.msra.mxu0 0
        %233 = vmatpush.bf16.msra.mxu0 0
        %234 = vmatpush.bf16.msra.mxu0 0
        %235 = vmatpush.bf16.msra.mxu0 0
        %236 = vmatpush.bf16.msra.mxu0 0
        %237 = vmatpush.bf16.msra.mxu0 %v226
        %238 = vmatpush.bf16.msra.mxu0 %v216
        %239 = vmatmul.bf16.gmra.mxu0 %v222
        %v240 = vpop.f32.mrf.mxu0
        %v241 = vadd.f32 0.0, %v240
        %v242 = vpop.f32.mrf.mxu0
        %243 = vdwg.mxu0
        %244 = vmatpush.bf16.msra.mxu0 0
        %245 = vmatpush.bf16.msra.mxu0 0
        %246 = vmatpush.bf16.msra.mxu0 0
        %247 = vmatpush.bf16.msra.mxu0 0
        %248 = vmatpush.bf16.msra.mxu0 0
        %249 = vmatpush.bf16.msra.mxu0 0
        %250 = vmatpush.bf16.msra.mxu0 %v229
        %251 = vmatpush.bf16.msra.mxu0 %v217
        %252 = vmatmul.bf16.gmra.mxu0 %v222
        %v253 = vpop.f32.mrf.mxu0
        %v254 = vadd.f32 0.0, %v253
        %v255 = vpop.f32.mrf.mxu0
        %256 = vdwg.mxu0
        %v257 = vadd.f32 %v241, %v254
        %258 = vadd.xlane.f32.xlu0 %v257
        %v259 = vpop.xlane.xlu0 %258
        %v260 = vadd.f32 %v259, 0.0
        %v261 = vmul.f32 %v241, %v241
        %v262 = vmul.f32 %v254, %v254
        %v263 = vadd.f32 %v261, %v262
        %264 = vadd.xlane.f32.xlu0 %v263
        %v265 = vpop.xlane.xlu0 %264
        %v266 = vadd.f32 %v265, 0.0
        %s267 = scalar_lea.vmem %s160, 16 [#allocation4]
        %v268 = vld [vmem:[%s267] sm:$0xff]
        %v269 = vld [vmem:[%s267 + $0x8] sm:$0xff]
        %270 = vrot.lane.b32.xlu0 %v268, 1
        %v271 = vpop.permute.xlu0 %270
        %272 = vrot.lane.b32.xlu0 %v269, 1
        %v273 = vpop.permute.xlu0 %272
        %v274 = vsel %vm200, %v271, %v273
        %v275 = vsel %vm200, %v273, %v271
        %v276 = vsel %vm194, 0.0, %v275
        %v277 = vsel %vm195, 0.0, %v274
        %278 = vrot.lane.b32.xlu0 %v268, 127
        %v279 = vpop.permute.xlu0 %278
        %280 = vrot.lane.b32.xlu0 %v269, 127
        %v281 = vpop.permute.xlu0 %280
        %v282 = vsel %vm211, %v279, %v281
        %v283 = vsel %vm211, %v281, %v279
        %v284 = vsel %vm205, 0.0, %v282
        %v285 = vsel %vm206, 0.0, %v283
        %v286 = vpack.c.bf16 %v268, %v276
        %v287 = vpack.c.bf16 %v269, %v277
        %v288 = vpack.c.bf16 %v284, %v284
        %v289 = vpack.c.bf16 %v285, %v285
        %v291 = vsel %vm224, %v288, 0
        %v294 = vsel %vm224, %v289, 0
        %296 = vmatpush.bf16.msra.mxu0 0
        %297 = vmatpush.bf16.msra.mxu0 0
        %298 = vmatpush.bf16.msra.mxu0 0
        %299 = vmatpush.bf16.msra.mxu0 0
        %300 = vmatpush.bf16.msra.mxu0 0
        %301 = vmatpush.bf16.msra.mxu0 0
        %302 = vmatpush.bf16.msra.mxu0 %v291
        %303 = vmatpush.bf16.msra.mxu0 %v286
        %304 = vmatmul.bf16.gmra.mxu0 %v222
        %v305 = vpop.f32.mrf.mxu0
        %v306 = vadd.f32 0.0, %v305
        %v307 = vpop.f32.mrf.mxu0
        %308 = vdwg.mxu0
        %309 = vmatpush.bf16.msra.mxu0 0
        %310 = vmatpush.bf16.msra.mxu0 0
        %311 = vmatpush.bf16.msra.mxu0 0
        %312 = vmatpush.bf16.msra.mxu0 0
        %313 = vmatpush.bf16.msra.mxu0 0
        %314 = vmatpush.bf16.msra.mxu0 0
        %315 = vmatpush.bf16.msra.mxu0 %v294
        %316 = vmatpush.bf16.msra.mxu0 %v287
        %317 = vmatmul.bf16.gmra.mxu0 %v222
        %v318 = vpop.f32.mrf.mxu0
        %v319 = vadd.f32 0.0, %v318
        %v320 = vpop.f32.mrf.mxu0
        %321 = vdwg.mxu0
        %v322 = vadd.f32 %v306, %v319
        %323 = vadd.xlane.f32.xlu0 %v322
        %v324 = vpop.xlane.xlu0 %323
        %v325 = vadd.f32 %v260, %v324
        %v326 = vmul.f32 %v306, %v306
        %v327 = vmul.f32 %v319, %v319
        %v328 = vadd.f32 %v326, %v327
        %329 = vadd.xlane.f32.xlu0 %v328
        %v330 = vpop.xlane.xlu0 %329
        %v331 = vadd.f32 %v266, %v330
        %v332 = vld [vmem:[#allocation2] sm:$0xff]
        %v333 = vadd.f32 %v332, %v325
        %vm334 = vcmask 7168
        %335 = vst.msk [vmem:[#allocation2] sm:$0xff] %vm334, %v333
        %v336 = vld [vmem:[#allocation3] sm:$0xff]
        %v337 = vadd.f32 %v336, %v331
        %338 = vst.msk [vmem:[#allocation3] sm:$0xff] %vm334, %v337
        %p339 = scmp.eq.s32.totalorder %s17, 1
        // Predicated region
        $region41: #{tpu_custom_call.1} parent=31 // pred_check
          %p340 = pneg %p339
        $region42: #{tpu_custom_call.1} parent=31 // pred_check_branch
          %342 = sbr.rel (%p340) target = $region44
        $region43: #{tpu_custom_call.1} parent=31 // pred_region
          %v343 = vld [vmem:[#allocation2] sm:$0xff]
          %v344 = vmul.f32 %v343, 0.0009765625
          %v345 = vld [vmem:[#allocation3] sm:$0xff]
          %v346 = vmul.f32 %v345, 0.0009765625
          %v347 = vmul.f32 %v344, %v344
          %v348 = vsub.f32 %v346, %v347
          %v349 = vld [vmem:[%s2] sm:$0xff]
          %v350 = vadd.f32 %v348, 1e-05
          %v351 = vrsqrt.pop %v350
          %v352 = vmul.f32 %v351, %v350
          %v353 = vmul.f32 %v352, %v351
          %v354 = vmul.f32 0.5, %v353
          %v355 = vsub.f32 1.5, %v354
          %v356 = vmul.f32 %v351, %v355
          %vm357 = vweird.f32 %v350
          %vm358 = vweird.f32 %v351
          %vm359 = vmor %vm357, %vm358
          %v360 = vsel %vm359, %v351, %v356
          %v361 = vmul.f32 %v349, %v360
          %v362 = vmul.f32 %v344, %v361
          %364 = vrot.lane.b32.xlu0 %v362, 1
          %v365 = vpop.permute.xlu0 %364
          %v367 = vsub.f32 %v349, %v365
          %v368 = vsel %vm334, %v361, %v367
          %vm369 = vcmask 15360
          %370 = vst.msk [vmem:[%s3] sm:$0xff] %vm369, %v368
        $region44: #{tpu_custom_call.1} parent=31 // pred_fallthru
          _
        // Predicated region
        $region45: #{tpu_custom_call.1} parent=31 // pred_check
          %p371 = pneg %p98
        $region46: #{tpu_custom_call.1} parent=31 // pred_check_branch
          %373 = sbr.rel (%p371) target = $region48
        $region47: #{tpu_custom_call.1} parent=31 // pred_region
          _
        $region48: #{tpu_custom_call.1} parent=31 // pred_fallthru
          _
        // Predicated region
        $region49: #{tpu_custom_call.1} parent=31 // pred_check
          %p374 = pneg %p98
        $region50: #{tpu_custom_call.1} parent=31 // pred_check_branch
          %376 = sbr.rel (%p374) target = $region52
        $region51: #{tpu_custom_call.1} parent=31 // pred_region
          _
        $region52: #{tpu_custom_call.1} parent=31 // pred_fallthru
          _
      $region32: #{tpu_custom_call.1} parent=5 // pred_fallthru
        _
      %p377 = scmp.le.s32.totalorder 2, %s12
      // Predicated region
      $region53: #{tpu_custom_call.1} parent=5 // pred_check
        %p378 = pneg %p377
      $region54: #{tpu_custom_call.1} parent=5 // pred_check_branch
        %380 = sbr.rel (%p378) target = $region56
      $region55: #{tpu_custom_call.1} parent=5 // pred_region
        %s381 = ssub.s32 %s12, 2
      $region56: #{tpu_custom_call.1} parent=5 // pred_fallthru
        _
    $region6: #{tpu_custom_call.1} parent=1 // loop_footer
      %s16 = sadd.s32 1, %s12
    $region7: #{tpu_custom_call.1} parent=1 // loop_footer_branch
      %11 = sbr.rel target = $region3
    $region8: #{tpu_custom_call.1} parent=1 // loop_exit
      _
    %382 = vsyncpa [#allocation5], 1
    %s383 = scalar_lea.sflag [#allocation5], 1
    %384 = vsyncpa %s383, 1

</llo_original>
